<compile_context>
chip_gen: v6e
topology: v6e:2x2x1
jax: 0.10.0
libtpu: 0.0.40
codegen_flags: <defaults>
</compile_context>

<pallas_src>
import functools

import jax
import jax.numpy as jnp
from jax.experimental import pallas as pl
from jax.experimental.pallas import tpu as pltpu

D_OUT = 310
D_OUT_PAD = 384  # next multiple of 128 above 310 (lane-dense output)

VMEM_BUDGET = 40 * 1024 * 1024  # per-TC working-set budget (fits v7x 64 MiB/TC)


def _vmem_bytes(tile, d_in):
    """Conservative VMEM working-set estimate for one grid step."""
    return (
        2 * tile * d_in * 4          # x tile, f32, double-buffered
        + 2 * tile * D_OUT_PAD * 4   # out tile, f32, double-buffered
        + 2 * d_in * D_OUT_PAD * 2   # bf16 weight (counted x2 to stay safe)
        + 2 * D_OUT_PAD * 4          # bias
    )


def _pick_batch_tile(B, tm, d_in):
    """Batch tile: multiple of 8 sublanes, <= B, >=2 tiles for large B, VMEM-safe."""
    if B <= 8:
        return B  # single block spanning the full (tiny) batch
    # At least 2 tiles once B is big enough so ("parallel",) spreads work across
    # both TensorCores on v7x.
    n_tiles = max(pl.cdiv(B, tm), 2 if B >= 256 else 1)
    tile = pl.cdiv(pl.cdiv(B, n_tiles), 8) * 8
    tile = min(tile, (B // 8) * 8)  # never larger than the array itself
    # Shrink until the working set fits the VMEM budget.
    while tile > 8 and _vmem_bytes(tile, d_in) > VMEM_BUDGET:
        tile = max(8, ((tile // 2) + 7) // 8 * 8)
    return tile


def mlp_kernel(x_ref, w_ref, b_ref, o_ref):
    # x stays f32 in HBM/VMEM; cast to bf16 in-register just before the MXU.
    z = jnp.dot(
        x_ref[...].astype(jnp.bfloat16),
        w_ref[...],
        preferred_element_type=jnp.float32,
    )
    # VPU: bias add in f32 (lane-broadcast of the (1, D_OUT_PAD) bias block).
    z = z + b_ref[...]
    # EUP: exp and approx reciprocal both on the transcendental slot.
    o_ref[...] = pl.reciprocal(1.0 + jnp.exp(-z), approx=True).astype(o_ref.dtype)


def prepare_params(w, b):
    """One-time (init-time) pad + cast of fc1 params.

    w: (D_in, 310) f32  ->  (D_in, 384) bf16
    b: (310,)      f32  ->  (1, 384)    f32
    """
    d_in = w.shape[0]
    assert w.shape == (d_in, D_OUT) and b.shape == (D_OUT,)
    w_p = (
        jnp.zeros((d_in, D_OUT_PAD), jnp.bfloat16)
        .at[:, :D_OUT]
        .set(w.astype(jnp.bfloat16))
    )
    b_p = (
        jnp.zeros((1, D_OUT_PAD), jnp.float32)
        .at[:, :D_OUT]
        .set(b.astype(jnp.float32))
    )
    return w_p, b_p


@functools.partial(
    jax.jit, static_argnames=("tm", "single_buffer_weights", "keep_padded")
)
def _mlp_forward(x, w_p, b_p, *, tm, single_buffer_weights, keep_padded):
    B, D_in = x.shape
    assert w_p.shape == (D_in, D_OUT_PAD) and w_p.dtype == jnp.bfloat16
    assert b_p.shape == (1, D_OUT_PAD)

    tm_eff = _pick_batch_tile(B, tm, D_in)
    grid = (pl.cdiv(B, tm_eff),)
    vmem_limit = min(_vmem_bytes(tm_eff, D_in) + (8 << 20), 64 << 20)

    if single_buffer_weights:
        # Constant index_map -> no point double-buffering: halve W's VMEM footprint.
        w_spec = pl.BlockSpec(
            (D_in, D_OUT_PAD), lambda i: (0, 0),
            pipeline_mode=pl.Buffered(buffer_count=1),
        )
        b_spec = pl.BlockSpec(
            (1, D_OUT_PAD), lambda i: (0, 0),
            pipeline_mode=pl.Buffered(buffer_count=1),
        )
    else:
        w_spec = pl.BlockSpec((D_in, D_OUT_PAD), lambda i: (0, 0))
        b_spec = pl.BlockSpec((1, D_OUT_PAD), lambda i: (0, 0))

    out = pl.pallas_call(
        mlp_kernel,
        out_shape=jax.ShapeDtypeStruct((B, D_OUT_PAD), jnp.float32),
        grid=grid,
        in_specs=[
            pl.BlockSpec((tm_eff, D_in), lambda i: (i, 0)),  # x tile (pipelined)
            w_spec,                                          # W resident
            b_spec,                                          # bias resident
        ],
        out_specs=pl.BlockSpec((tm_eff, D_OUT_PAD), lambda i: (i, 0)),
        compiler_params=pltpu.CompilerParams(
            dimension_semantics=("parallel",),   # batch tiles shard across TCs
            vmem_limit_bytes=vmem_limit,
        ),
    )(x, w_p, b_p)

    if keep_padded:
        # For fused consumers: cols [310:384] hold sigmoid(0) = 0.5.
        return out
    return out[:, :D_OUT]


def mlp_forward(x, w_p, b_p, *, tm=512, keep_padded=False):
    """x: (B, D_in) f32; (w_p, b_p) from prepare_params(). Returns (B, 310) f32."""
    try:
        return _mlp_forward(
            x, w_p, b_p, tm=tm, single_buffer_weights=True, keep_padded=keep_padded
        )
    except Exception:
        # Fallback for jax versions without single-buffer pipeline_mode support.
        return _mlp_forward(
            x, w_p, b_p, tm=tm, single_buffer_weights=False, keep_padded=keep_padded
        )


def init_params(key, input_size, output_size=D_OUT):
    # Mimic nn.Linear default init: U(-1/sqrt(in), 1/sqrt(in)) for weight & bias.
    kw, kb = jax.random.split(key)
    bound = 1.0 / jnp.sqrt(jnp.float32(input_size))
    # PyTorch stores weight as (out, in); the wrapper transposes to (in, out).
    w_torch_layout = jax.random.uniform(
        kw, (output_size, input_size), jnp.float32, -bound, bound
    )
    b = jax.random.uniform(kb, (output_size,), jnp.float32, -bound, bound)
    return w_torch_layout, b


if __name__ == "__main__":
    key = jax.random.PRNGKey(0)
    k_x, k_p = jax.random.split(key)

    batch = 8
    input_size = 32

    x = jax.random.normal(k_x, (batch, input_size), jnp.float32)
    w_torch, b = init_params(k_p, input_size)
    w = w_torch.T  # (D_in, D_out) for the kernel

    # Pad/cast once at init (hoisted out of the per-call path).
    w_p, b_p = prepare_params(w, b)

    out = mlp_forward(x, w_p, b_p)
    out = jax.block_until_ready(out)

    # Reference with the same bf16-matmul / f32-accumulate contraction.
    z_ref = jnp.dot(
        x.astype(jnp.bfloat16),
        w.astype(jnp.bfloat16),
        preferred_element_type=jnp.float32,
    ) + b[None, :]
    ref = jax.nn.sigmoid(z_ref)

    assert out.shape == (batch, D_OUT)
    assert jnp.allclose(out, ref, atol=1e-2, rtol=1e-2)

    print("KERNEL_OK")
</pallas_src>

<mosaic_0001>
module attributes {stable_mosaic.version = 11 : i64} {
  func.func @mlp_kernel(%arg0: i32, %arg1: memref<8x32xf32, #tpu.memory_space<vmem>>, %arg2: memref<32x384xbf16, #tpu.memory_space<vmem>>, %arg3: memref<1x384xf32, #tpu.memory_space<vmem>>, %arg4: memref<8x384xf32, #tpu.memory_space<vmem>>) attributes {dimension_semantics = [#tpu.dimension_semantics<parallel>], iteration_bounds = array<i64: 1>, scalar_prefetch = 0 : i64, scratch_operands = 0 : i64, tpu.core_type = #tpu.core_type<tc>, window_params = [{transform_indices = @transform_0, window_bounds = array<i64: 8, 32>}, {pipeline_mode = #tpu.pipeline_mode<synchronous>, transform_indices = @transform_1, window_bounds = array<i64: 32, 384>}, {pipeline_mode = #tpu.pipeline_mode<synchronous>, transform_indices = @transform_2, window_bounds = array<i64: 1, 384>}, {transform_indices = @transform_3, window_bounds = array<i64: 8, 384>}]} {
    %c0 = arith.constant 0 : index
    %c0_0 = arith.constant 0 : index
    %0 = vector.load %arg1[%c0, %c0_0] : memref<8x32xf32, #tpu.memory_space<vmem>>, vector<8x32xf32>
    %1 = arith.truncf %0 : vector<8x32xf32> to vector<8x32xbf16>
    %c0_1 = arith.constant 0 : index
    %c0_2 = arith.constant 0 : index
    %2 = vector.load %arg2[%c0_1, %c0_2] : memref<32x384xbf16, #tpu.memory_space<vmem>>, vector<32x384xbf16>
    %cst = arith.constant dense<0.000000e+00> : vector<8x384xf32>
    %3 = tpu.matmul %1, %2, %cst {dimension_numbers = #tpu.dot_dimension_numbers<[1], [0], [0], [1], [0, 0, 1, 1], [], []>} : vector<8x32xbf16>, vector<32x384xbf16>, vector<8x384xf32> -> vector<8x384xf32>
    %c0_3 = arith.constant 0 : index
    %c0_4 = arith.constant 0 : index
    %4 = vector.load %arg3[%c0_3, %c0_4] : memref<1x384xf32, #tpu.memory_space<vmem>>, vector<1x384xf32>
    %5 = vector.broadcast %4 : vector<1x384xf32> to vector<8x384xf32>
    %6 = arith.addf %3, %5 : vector<8x384xf32>
    %cst_5 = arith.constant 0.000000e+00 : f32
    %7 = vector.broadcast %cst_5 : f32 to vector<8x384xf32>
    %8 = arith.subf %7, %6 : vector<8x384xf32>
    %9 = math.exp %8 : vector<8x384xf32>
    %cst_6 = arith.constant 1.000000e+00 : f32
    %10 = vector.broadcast %cst_6 : f32 to vector<8x384xf32>
    %11 = arith.addf %10, %9 : vector<8x384xf32>
    %12 = tpu.reciprocal %11 {approx = true} : vector<8x384xf32> -> vector<8x384xf32>
    %c0_7 = arith.constant 0 : index
    %c0_8 = arith.constant 0 : index
    %13 = vector.load %arg4[%c0_7, %c0_8] : memref<8x384xf32, #tpu.memory_space<vmem>>, vector<8x384xf32>
    tpu.vector_store %arg4[%c0_7, %c0_8], %12 {strides = array<i32>} : memref<8x384xf32, #tpu.memory_space<vmem>>, vector<8x384xf32>,
    return
  }
  func.func @transform_0(%arg0: i32) -> (i32, i32) {
    %c0_i32 = arith.constant 0 : i32
    %c0_i32_0 = arith.constant 0 : i32
    return %arg0, %c0_i32 : i32, i32
  }
  func.func @transform_1(%arg0: i32) -> (i32, i32) {
    %c0_i32 = arith.constant 0 : i32
    %c0_i32_0 = arith.constant 0 : i32
    %c0_i32_1 = arith.constant 0 : i32
    return %c0_i32, %c0_i32_0 : i32, i32
  }
  func.func @transform_2(%arg0: i32) -> (i32, i32) {
    %c0_i32 = arith.constant 0 : i32
    %c0_i32_0 = arith.constant 0 : i32
    %c0_i32_1 = arith.constant 0 : i32
    return %c0_i32, %c0_i32_0 : i32, i32
  }
  func.func @transform_3(%arg0: i32) -> (i32, i32) {
    %c0_i32 = arith.constant 0 : i32
    %c0_i32_0 = arith.constant 0 : i32
    return %arg0, %c0_i32 : i32, i32
  }
}

module attributes {stable_mosaic.version = 11 : i64} {
  func.func @mlp_kernel(%arg0: i32, %arg1: memref<8x32xf32, #tpu.memory_space<vmem>>, %arg2: memref<32x384xbf16, #tpu.memory_space<vmem>>, %arg3: memref<1x384xf32, #tpu.memory_space<vmem>>, %arg4: memref<8x384xf32, #tpu.memory_space<vmem>>) attributes {dimension_semantics = [#tpu.dimension_semantics<parallel>], iteration_bounds = array<i64: 1>, scalar_prefetch = 0 : i64, scratch_operands = 0 : i64, tpu.core_type = #tpu.core_type<tc>, window_params = [{transform_indices = @transform_0, window_bounds = array<i64: 8, 32>}, {pipeline_mode = #tpu.pipeline_mode<synchronous>, transform_indices = @transform_1, window_bounds = array<i64: 32, 384>}, {pipeline_mode = #tpu.pipeline_mode<synchronous>, transform_indices = @transform_2, window_bounds = array<i64: 1, 384>}, {transform_indices = @transform_3, window_bounds = array<i64: 8, 384>}]} {
    %c0 = arith.constant 0 : index
    %c0_0 = arith.constant 0 : index
    %0 = vector.load %arg1[%c0, %c0_0] : memref<8x32xf32, #tpu.memory_space<vmem>>, vector<8x32xf32>
    %1 = arith.truncf %0 : vector<8x32xf32> to vector<8x32xbf16>
    %c0_1 = arith.constant 0 : index
    %c0_2 = arith.constant 0 : index
    %2 = vector.load %arg2[%c0_1, %c0_2] : memref<32x384xbf16, #tpu.memory_space<vmem>>, vector<32x384xbf16>
    %cst = arith.constant dense<0.000000e+00> : vector<8x384xf32>
    %3 = tpu.matmul %1, %2, %cst {dimension_numbers = #tpu.dot_dimension_numbers<[1], [0], [0], [1], [0, 0, 1, 1], [], []>} : vector<8x32xbf16>, vector<32x384xbf16>, vector<8x384xf32> -> vector<8x384xf32>
    %c0_3 = arith.constant 0 : index
    %c0_4 = arith.constant 0 : index
    %4 = vector.load %arg3[%c0_3, %c0_4] : memref<1x384xf32, #tpu.memory_space<vmem>>, vector<1x384xf32>
    %5 = vector.broadcast %4 : vector<1x384xf32> to vector<8x384xf32>
    %6 = arith.addf %3, %5 : vector<8x384xf32>
    %cst_5 = arith.constant 0.000000e+00 : f32
    %7 = vector.broadcast %cst_5 : f32 to vector<8x384xf32>
    %8 = arith.subf %7, %6 : vector<8x384xf32>
    %9 = math.exp %8 : vector<8x384xf32>
    %cst_6 = arith.constant 1.000000e+00 : f32
    %10 = vector.broadcast %cst_6 : f32 to vector<8x384xf32>
    %11 = arith.addf %10, %9 : vector<8x384xf32>
    %12 = tpu.reciprocal %11 {approx = true} : vector<8x384xf32> -> vector<8x384xf32>
    %c0_7 = arith.constant 0 : index
    %c0_8 = arith.constant 0 : index
    %13 = vector.load %arg4[%c0_7, %c0_8] : memref<8x384xf32, #tpu.memory_space<vmem>>, vector<8x384xf32>
    tpu.vector_store %arg4[%c0_7, %c0_8], %12 {strides = array<i32>} : memref<8x384xf32, #tpu.memory_space<vmem>>, vector<8x384xf32>,
    return
  }
  func.func @transform_0(%arg0: i32) -> (i32, i32) {
    %c0_i32 = arith.constant 0 : i32
    %c0_i32_0 = arith.constant 0 : i32
    return %arg0, %c0_i32 : i32, i32
  }
  func.func @transform_1(%arg0: i32) -> (i32, i32) {
    %c0_i32 = arith.constant 0 : i32
    %c0_i32_0 = arith.constant 0 : i32
    %c0_i32_1 = arith.constant 0 : i32
    return %c0_i32, %c0_i32_0 : i32, i32
  }
  func.func @transform_2(%arg0: i32) -> (i32, i32) {
    %c0_i32 = arith.constant 0 : i32
    %c0_i32_0 = arith.constant 0 : i32
    %c0_i32_1 = arith.constant 0 : i32
    return %c0_i32, %c0_i32_0 : i32, i32
  }
  func.func @transform_3(%arg0: i32) -> (i32, i32) {
    %c0_i32 = arith.constant 0 : i32
    %c0_i32_0 = arith.constant 0 : i32
    return %arg0, %c0_i32 : i32, i32
  }
}

</mosaic_0001>

<llo_original>
// kernel: _mlp_forward.1
$region0: #{_mlp_forward.1}
  #allocation0 [shape = 'u32[]', space=smem, size = 0x4, offset = 0x4, fixed_abs, tag = 'smem constant byte address 0x4 - core index']
  #allocation1 [shape = 'u32[144,128]{1,0:T(1,128)}', space=vmem, size = 0x12000, scoped, tag = 'internal scratch']
  %s0 = inlined_call_operand.hbm [shape: f32[8,32], index: 0, kind: input, shape index: {}]
  %s1 = inlined_call_operand.hbm [shape: bf16[32,384], index: 1, kind: input, shape index: {}]
  %s2 = inlined_call_operand.vmem [shape: f32[1,384], index: 2, kind: input, shape index: {}]
  %s3 = inlined_call_operand.hbm [shape: f32[8,384], index: 3, kind: output, shape index: {}]
  %s4 = sld [smem:[#allocation0]]
  $region30: #{_mlp_forward.1} parent=0
    _
  %s6 = ssub.s32 1, %s4
  %s7 = scalar_select 0, %s6, %s4
  $region1: #{_mlp_forward.1} parent=0
    #allocation2 [shape = 'u8[4096]{0}', space=vmem, size = 0x1000, scoped, tag = 'input window, operand 0, single buffered']
    #allocation3 [shape = 's32[1]{0}', space=sflag, size = 0x4, scoped, tag = 'scoped memory for _mlp_forward.1']
    #allocation4 [shape = 's32[1]{0}', space=sflag, size = 0x4, scoped, tag = 'scoped memory for _mlp_forward.1']
    #allocation5 [shape = 'u8[24576]{0}', space=vmem, size = 0x6000, scoped, tag = 'input window, operand 1, single buffered']
    #allocation6 [shape = 's32[1]{0}', space=sflag, size = 0x4, scoped, tag = 'scoped memory for _mlp_forward.1']
    #allocation7 [shape = 'u8[12288]{0}', space=vmem, size = 0x3000, scoped, tag = 'output window, operand 0, single buffered']
    %8 = vsyncpa [#allocation3], 0
    %9 = vsyncpa [#allocation6], 0
    %10 = vsyncpa [#allocation4], 0
    // Predicated region
    $region2: #{_mlp_forward.1} parent=1 // pred_check
      _
    $region3: #{_mlp_forward.1} parent=1 // pred_check_branch
      %12 = sbr.rel (0) target = $region5
    $region4: #{_mlp_forward.1} parent=1 // pred_region
      %s14 = ssub.s32 128, 128
      %15 = vsyncadd [#allocation3], %s14
      %s17 = sshll.u32 [#allocation2], 4
      %s18 = int_to_ptr.vmem [resolvable:$true] %s17
      %20 = dma.hbm_to_vmem [thread:$0]  %s0, 128, %s18, [#allocation3]
    $region5: #{_mlp_forward.1} parent=1 // pred_fallthru
      _
    // Predicated region
    $region6: #{_mlp_forward.1} parent=1 // pred_check
      _
    $region7: #{_mlp_forward.1} parent=1 // pred_check_branch
      %22 = sbr.rel (0) target = $region9
    $region8: #{_mlp_forward.1} parent=1 // pred_region
      %s24 = ssub.s32 768, 768
      %25 = vsyncadd [#allocation6], %s24
      %s26 = sshll.u32 [#allocation5], 4
      %s27 = int_to_ptr.vmem [resolvable:$true] %s26
      %32 = dma.hbm_to_vmem [thread:$0]  %s1, 768, %s27, [#allocation6], 192, 192, 12
    $region9: #{_mlp_forward.1} parent=1 // pred_fallthru
      _
    // Predicated region
    $region10: #{_mlp_forward.1} parent=1 // pred_check
      _
    $region11: #{_mlp_forward.1} parent=1 // pred_check_branch
      %34 = sbr.rel (0) target = $region13
    $region12: #{_mlp_forward.1} parent=1 // pred_region
      _
    $region13: #{_mlp_forward.1} parent=1 // pred_fallthru
      _
    // Predicated region
    $region14: #{_mlp_forward.1} parent=1 // pred_check
      _
    $region15: #{_mlp_forward.1} parent=1 // pred_check_branch
      %36 = sbr.rel (0) target = $region17
    $region16: #{_mlp_forward.1} parent=1 // pred_region
      %37 = dma.done [#allocation3], 128
    $region17: #{_mlp_forward.1} parent=1 // pred_fallthru
      _
    // Predicated region
    $region18: #{_mlp_forward.1} parent=1 // pred_check
      _
    $region19: #{_mlp_forward.1} parent=1 // pred_check_branch
      %39 = sbr.rel (0) target = $region21
    $region20: #{_mlp_forward.1} parent=1 // pred_region
      %40 = dma.done [#allocation6], 768
    $region21: #{_mlp_forward.1} parent=1 // pred_fallthru
      _
    %v42 = vld [vmem:[#allocation2] sm:$0xff]
    %v43 = vpack.c.bf16 %v42, %v42
    %v44 = vld [vmem:[#allocation5] sm:$0xff]
    %v45 = vld [vmem:[#allocation5 + $0x8] sm:$0xf]
    %v46 = vld [vmem:[#allocation5 + $0xc] sm:$0xff]
    %v47 = vld [vmem:[#allocation5 + $0x14] sm:$0xf]
    %v48 = vld [vmem:[#allocation5 + $0x18] sm:$0xff]
    %v49 = vld [vmem:[#allocation5 + $0x20] sm:$0xf]
    %v50 = vld [vmem:[#allocation5 + $0x24] sm:$0xff]
    %v51 = vld [vmem:[#allocation5 + $0x2c] sm:$0xf]
    %v52 = vld [vmem:[%s2] sm:$0x7]
    %v54 = vlaneseq
    %v55 = vshrl.u32 %v54, 7
    %v56 = vsub.s32 0, %v55
    %v57 = vrot.slane %v52, %v56
    %v58 = vlaneseq
    %v59 = vshrl.u32 %v58, 7
    %v60 = vsub.s32 1, %v59
    %v61 = vrot.slane %v52, %v60
    %v62 = vlaneseq
    %v63 = vshrl.u32 %v62, 7
    %v64 = vsub.s32 2, %v63
    %v65 = vrot.slane %v52, %v64
    %v77 = vunpack.c.l.b16 %v44
    %v78 = vunpack.c.h.b16 %v44
    %v79 = vunpack.c.l.b16 %v45
    %v80 = vunpack.c.l.b16 %v46
    %v81 = vunpack.c.h.b16 %v46
    %v82 = vunpack.c.l.b16 %v47
    %v83 = vunpack.c.l.b16 %v48
    %v84 = vunpack.c.h.b16 %v48
    %v85 = vunpack.c.l.b16 %v49
    %v86 = vunpack.c.l.b16 %v50
    %v87 = vunpack.c.h.b16 %v50
    %v88 = vunpack.c.l.b16 %v51
    %v89 = vpack.c.b16 %v80, %v77
    %v90 = vpack.c.b16 %v81, %v78
    %v91 = vpack.c.b16 %v82, %v79
    %v92 = vpack.c.b16 %v86, %v83
    %v93 = vpack.c.b16 %v87, %v84
    %v94 = vpack.c.b16 %v88, %v85
    %vm101 = vcmask 261120
    %v103 = vsel %vm101, %v43, 0
    %105 = vmatprep.subr.bf16.mxu0 0
    %106 = vmatpush1.bf16.msra.mxu0 0
    %107 = vmatprep.subr.bf16.mxu0 0
    %108 = vmatpush1.bf16.msra.mxu0 0
    %109 = vmatprep.subr.bf16.mxu0 0
    %110 = vmatpush1.bf16.msra.mxu0 0
    %111 = vmatprep.subr.bf16.mxu0 0
    %112 = vmatpush1.bf16.msra.mxu0 0
    %113 = vmatprep.subr.bf16.mxu0 0
    %114 = vmatpush1.bf16.msra.mxu0 0
    %115 = vmatprep.subr.bf16.mxu0 0
    %116 = vmatpush1.bf16.msra.mxu0 0
    %117 = vmatprep.subr.bf16.mxu0 %v93
    %118 = vmatpush1.bf16.msra.mxu0 %v92
    %119 = vmatprep.subr.bf16.mxu0 %v90
    %120 = vmatpush1.bf16.msra.mxu0 %v89
    %121 = vmatprep.subr.bf16.mxu0 0
    %122 = vmatpush2.bf16.msra.mxu0 0
    %123 = vmatprep.subr.bf16.mxu0 0
    %124 = vmatpush2.bf16.msra.mxu0 0
    %125 = vmatprep.subr.bf16.mxu0 0
    %126 = vmatpush2.bf16.msra.mxu0 0
    %127 = vmatprep.subr.bf16.mxu0 0
    %128 = vmatpush2.bf16.msra.mxu0 0
    %129 = vmatprep.subr.bf16.mxu0 0
    %130 = vmatpush2.bf16.msra.mxu0 0
    %131 = vmatprep.subr.bf16.mxu0 0
    %132 = vmatpush2.bf16.msra.mxu0 0
    %133 = vmatprep.subr.bf16.mxu0 0
    %134 = vmatpush2.bf16.msra.mxu0 0
    %135 = vmatprep.subr.bf16.mxu0 0
    %136 = vmatpush2.bf16.msra.mxu0 0
    %137 = vmatprep.mubr.bf16.mxu0 0
    %138 = vmatmul.mubr.bf16.gmra.mxu0 %v103
    %v139 = vpop.f32.mrf.mxu0
    %v140 = vadd.f32 %v57, %v139
    %v141 = vpop.f32.mrf.mxu0
    %v142 = vadd.f32 %v61, %v141
    %v143 = vpop.f32.mrf.mxu0
    %v144 = vpop.f32.mrf.mxu0
    %145 = vdwg.mxu0
    %146 = vmatprep.subr.bf16.mxu0 0
    %147 = vmatpush1.bf16.msra.mxu0 0
    %148 = vmatprep.subr.bf16.mxu0 0
    %149 = vmatpush1.bf16.msra.mxu0 0
    %150 = vmatprep.subr.bf16.mxu0 0
    %151 = vmatpush1.bf16.msra.mxu0 0
    %152 = vmatprep.subr.bf16.mxu0 0
    %153 = vmatpush1.bf16.msra.mxu0 0
    %154 = vmatprep.subr.bf16.mxu0 0
    %155 = vmatpush1.bf16.msra.mxu0 0
    %156 = vmatprep.subr.bf16.mxu0 0
    %157 = vmatpush1.bf16.msra.mxu0 0
    %158 = vmatprep.subr.bf16.mxu0 0
    %159 = vmatpush1.bf16.msra.mxu0 %v94
    %160 = vmatprep.subr.bf16.mxu0 0
    %161 = vmatpush1.bf16.msra.mxu0 %v91
    %162 = vmatprep.subr.bf16.mxu0 0
    %163 = vmatpush2.bf16.msra.mxu0 0
    %164 = vmatprep.subr.bf16.mxu0 0
    %165 = vmatpush2.bf16.msra.mxu0 0
    %166 = vmatprep.subr.bf16.mxu0 0
    %167 = vmatpush2.bf16.msra.mxu0 0
    %168 = vmatprep.subr.bf16.mxu0 0
    %169 = vmatpush2.bf16.msra.mxu0 0
    %170 = vmatprep.subr.bf16.mxu0 0
    %171 = vmatpush2.bf16.msra.mxu0 0
    %172 = vmatprep.subr.bf16.mxu0 0
    %173 = vmatpush2.bf16.msra.mxu0 0
    %174 = vmatprep.subr.bf16.mxu0 0
    %175 = vmatpush2.bf16.msra.mxu0 0
    %176 = vmatprep.subr.bf16.mxu0 0
    %177 = vmatpush2.bf16.msra.mxu0 0
    %178 = vmatprep.mubr.bf16.mxu0 0
    %179 = vmatmul.mubr.bf16.gmra.mxu0 %v103
    %v180 = vpop.f32.mrf.mxu0
    %v181 = vadd.f32 %v65, %v180
    %v182 = vpop.f32.mrf.mxu0
    %v183 = vpop.f32.mrf.mxu0
    %v184 = vpop.f32.mrf.mxu0
    %185 = vdwg.mxu0
    %v186 = vsub.f32 0.0, %v140
    %v187 = vsub.f32 0.0, %v142
    %v188 = vsub.f32 0.0, %v181
    %v189 = vmul.f32 %v186, 1.442695
    %v190 = vpow.pop %v189
    %v191 = vmul.f32 %v187, 1.442695
    %v192 = vpow.pop %v191
    %v193 = vmul.f32 %v188, 1.442695
    %v194 = vpow.pop %v193
    %v195 = vadd.f32 %v190, 1.0
    %v196 = vadd.f32 %v192, 1.0
    %v197 = vadd.f32 %v194, 1.0
    %v198 = vrcp.pop %v195
    %v199 = vrcp.pop %v196
    %v200 = vrcp.pop %v197
    %201 = vst [vmem:[#allocation7] sm:$0xff] %v198
    %202 = vst [vmem:[#allocation7 + $0x8] sm:$0xff] %v199
    %203 = vst [vmem:[#allocation7 + $0x10] sm:$0xff] %v200
    // Predicated region
    $region22: #{_mlp_forward.1} parent=1 // pred_check
      _
    $region23: #{_mlp_forward.1} parent=1 // pred_check_branch
      %205 = sbr.rel (0) target = $region25
    $region24: #{_mlp_forward.1} parent=1 // pred_region
      %s207 = ssub.s32 384, 384
      %208 = vsyncadd [#allocation4], %s207
      %s210 = sshll.u32 [#allocation7], 4
      %s211 = int_to_ptr.vmem [resolvable:$true] %s210
      %213 = dma.vmem_to_hbm [thread:$0]  %s211, 384, %s3, [#allocation4]
    $region25: #{_mlp_forward.1} parent=1 // pred_fallthru
      _
    // Predicated region
    $region26: #{_mlp_forward.1} parent=1 // pred_check
      _
    $region27: #{_mlp_forward.1} parent=1 // pred_check_branch
      %215 = sbr.rel (0) target = $region29
    $region28: #{_mlp_forward.1} parent=1 // pred_region
      %216 = dma.done [#allocation4], 384
    $region29: #{_mlp_forward.1} parent=1 // pred_fallthru
      _
    %217 = vsyncpa [#allocation3], 1
    %218 = vsyncpa [#allocation6], 1
    %219 = vsyncpa [#allocation4], 1

// kernel: _mlp_forward.1
$region0: #{_mlp_forward.1}
  #allocation0 [shape = 'u32[]', space=smem, size = 0x4, offset = 0x4, fixed_abs, tag = 'smem constant byte address 0x4 - core index']
  #allocation1 [shape = 'u32[144,128]{1,0:T(1,128)}', space=vmem, size = 0x12000, scoped, tag = 'internal scratch']
  %s0 = inlined_call_operand.hbm [shape: f32[8,32], index: 0, kind: input, shape index: {}]
  %s1 = inlined_call_operand.hbm [shape: bf16[32,384], index: 1, kind: input, shape index: {}]
  %s2 = inlined_call_operand.vmem [shape: f32[1,384], index: 2, kind: input, shape index: {}]
  %s3 = inlined_call_operand.hbm [shape: f32[8,384], index: 3, kind: output, shape index: {}]
  %s4 = sld [smem:[#allocation0]]
  $region30: #{_mlp_forward.1} parent=0
    _
  %s6 = ssub.s32 1, %s4
  %s7 = scalar_select 0, %s6, %s4
  $region1: #{_mlp_forward.1} parent=0
    #allocation2 [shape = 'u8[4096]{0}', space=vmem, size = 0x1000, scoped, tag = 'input window, operand 0, single buffered']
    #allocation3 [shape = 's32[1]{0}', space=sflag, size = 0x4, scoped, tag = 'scoped memory for _mlp_forward.1']
    #allocation4 [shape = 's32[1]{0}', space=sflag, size = 0x4, scoped, tag = 'scoped memory for _mlp_forward.1']
    #allocation5 [shape = 'u8[24576]{0}', space=vmem, size = 0x6000, scoped, tag = 'input window, operand 1, single buffered']
    #allocation6 [shape = 's32[1]{0}', space=sflag, size = 0x4, scoped, tag = 'scoped memory for _mlp_forward.1']
    #allocation7 [shape = 'u8[12288]{0}', space=vmem, size = 0x3000, scoped, tag = 'output window, operand 0, single buffered']
    %8 = vsyncpa [#allocation3], 0
    %9 = vsyncpa [#allocation6], 0
    %10 = vsyncpa [#allocation4], 0
    // Predicated region
    $region2: #{_mlp_forward.1} parent=1 // pred_check
      _
    $region3: #{_mlp_forward.1} parent=1 // pred_check_branch
      %12 = sbr.rel (0) target = $region5
    $region4: #{_mlp_forward.1} parent=1 // pred_region
      %s14 = ssub.s32 128, 128
      %15 = vsyncadd [#allocation3], %s14
      %s17 = sshll.u32 [#allocation2], 4
      %s18 = int_to_ptr.vmem [resolvable:$true] %s17
      %20 = dma.hbm_to_vmem [thread:$0]  %s0, 128, %s18, [#allocation3]
    $region5: #{_mlp_forward.1} parent=1 // pred_fallthru
      _
    // Predicated region
    $region6: #{_mlp_forward.1} parent=1 // pred_check
      _
    $region7: #{_mlp_forward.1} parent=1 // pred_check_branch
      %22 = sbr.rel (0) target = $region9
    $region8: #{_mlp_forward.1} parent=1 // pred_region
      %s24 = ssub.s32 768, 768
      %25 = vsyncadd [#allocation6], %s24
      %s26 = sshll.u32 [#allocation5], 4
      %s27 = int_to_ptr.vmem [resolvable:$true] %s26
      %32 = dma.hbm_to_vmem [thread:$0]  %s1, 768, %s27, [#allocation6], 192, 192, 12
    $region9: #{_mlp_forward.1} parent=1 // pred_fallthru
      _
    // Predicated region
    $region10: #{_mlp_forward.1} parent=1 // pred_check
      _
    $region11: #{_mlp_forward.1} parent=1 // pred_check_branch
      %34 = sbr.rel (0) target = $region13
    $region12: #{_mlp_forward.1} parent=1 // pred_region
      _
    $region13: #{_mlp_forward.1} parent=1 // pred_fallthru
      _
    // Predicated region
    $region14: #{_mlp_forward.1} parent=1 // pred_check
      _
    $region15: #{_mlp_forward.1} parent=1 // pred_check_branch
      %36 = sbr.rel (0) target = $region17
    $region16: #{_mlp_forward.1} parent=1 // pred_region
      %37 = dma.done [#allocation3], 128
    $region17: #{_mlp_forward.1} parent=1 // pred_fallthru
      _
    // Predicated region
    $region18: #{_mlp_forward.1} parent=1 // pred_check
      _
    $region19: #{_mlp_forward.1} parent=1 // pred_check_branch
      %39 = sbr.rel (0) target = $region21
    $region20: #{_mlp_forward.1} parent=1 // pred_region
      %40 = dma.done [#allocation6], 768
    $region21: #{_mlp_forward.1} parent=1 // pred_fallthru
      _
    %v42 = vld [vmem:[#allocation2] sm:$0xff]
    %v43 = vpack.c.bf16 %v42, %v42
    %v44 = vld [vmem:[#allocation5] sm:$0xff]
    %v45 = vld [vmem:[#allocation5 + $0x8] sm:$0xf]
    %v46 = vld [vmem:[#allocation5 + $0xc] sm:$0xff]
    %v47 = vld [vmem:[#allocation5 + $0x14] sm:$0xf]
    %v48 = vld [vmem:[#allocation5 + $0x18] sm:$0xff]
    %v49 = vld [vmem:[#allocation5 + $0x20] sm:$0xf]
    %v50 = vld [vmem:[#allocation5 + $0x24] sm:$0xff]
    %v51 = vld [vmem:[#allocation5 + $0x2c] sm:$0xf]
    %v52 = vld [vmem:[%s2] sm:$0x7]
    %v54 = vlaneseq
    %v55 = vshrl.u32 %v54, 7
    %v56 = vsub.s32 0, %v55
    %v57 = vrot.slane %v52, %v56
    %v58 = vlaneseq
    %v59 = vshrl.u32 %v58, 7
    %v60 = vsub.s32 1, %v59
    %v61 = vrot.slane %v52, %v60
    %v62 = vlaneseq
    %v63 = vshrl.u32 %v62, 7
    %v64 = vsub.s32 2, %v63
    %v65 = vrot.slane %v52, %v64
    %v77 = vunpack.c.l.b16 %v44
    %v78 = vunpack.c.h.b16 %v44
    %v79 = vunpack.c.l.b16 %v45
    %v80 = vunpack.c.l.b16 %v46
    %v81 = vunpack.c.h.b16 %v46
    %v82 = vunpack.c.l.b16 %v47
    %v83 = vunpack.c.l.b16 %v48
    %v84 = vunpack.c.h.b16 %v48
    %v85 = vunpack.c.l.b16 %v49
    %v86 = vunpack.c.l.b16 %v50
    %v87 = vunpack.c.h.b16 %v50
    %v88 = vunpack.c.l.b16 %v51
    %v89 = vpack.c.b16 %v80, %v77
    %v90 = vpack.c.b16 %v81, %v78
    %v91 = vpack.c.b16 %v82, %v79
    %v92 = vpack.c.b16 %v86, %v83
    %v93 = vpack.c.b16 %v87, %v84
    %v94 = vpack.c.b16 %v88, %v85
    %vm101 = vcmask 261120
    %v103 = vsel %vm101, %v43, 0
    %105 = vmatprep.subr.bf16.mxu0 0
    %106 = vmatpush1.bf16.msra.mxu0 0
    %107 = vmatprep.subr.bf16.mxu0 0
    %108 = vmatpush1.bf16.msra.mxu0 0
    %109 = vmatprep.subr.bf16.mxu0 0
    %110 = vmatpush1.bf16.msra.mxu0 0
    %111 = vmatprep.subr.bf16.mxu0 0
    %112 = vmatpush1.bf16.msra.mxu0 0
    %113 = vmatprep.subr.bf16.mxu0 0
    %114 = vmatpush1.bf16.msra.mxu0 0
    %115 = vmatprep.subr.bf16.mxu0 0
    %116 = vmatpush1.bf16.msra.mxu0 0
    %117 = vmatprep.subr.bf16.mxu0 %v93
    %118 = vmatpush1.bf16.msra.mxu0 %v92
    %119 = vmatprep.subr.bf16.mxu0 %v90
    %120 = vmatpush1.bf16.msra.mxu0 %v89
    %121 = vmatprep.subr.bf16.mxu0 0
    %122 = vmatpush2.bf16.msra.mxu0 0
    %123 = vmatprep.subr.bf16.mxu0 0
    %124 = vmatpush2.bf16.msra.mxu0 0
    %125 = vmatprep.subr.bf16.mxu0 0
    %126 = vmatpush2.bf16.msra.mxu0 0
    %127 = vmatprep.subr.bf16.mxu0 0
    %128 = vmatpush2.bf16.msra.mxu0 0
    %129 = vmatprep.subr.bf16.mxu0 0
    %130 = vmatpush2.bf16.msra.mxu0 0
    %131 = vmatprep.subr.bf16.mxu0 0
    %132 = vmatpush2.bf16.msra.mxu0 0
    %133 = vmatprep.subr.bf16.mxu0 0
    %134 = vmatpush2.bf16.msra.mxu0 0
    %135 = vmatprep.subr.bf16.mxu0 0
    %136 = vmatpush2.bf16.msra.mxu0 0
    %137 = vmatprep.mubr.bf16.mxu0 0
    %138 = vmatmul.mubr.bf16.gmra.mxu0 %v103
    %v139 = vpop.f32.mrf.mxu0
    %v140 = vadd.f32 %v57, %v139
    %v141 = vpop.f32.mrf.mxu0
    %v142 = vadd.f32 %v61, %v141
    %v143 = vpop.f32.mrf.mxu0
    %v144 = vpop.f32.mrf.mxu0
    %145 = vdwg.mxu0
    %146 = vmatprep.subr.bf16.mxu0 0
    %147 = vmatpush1.bf16.msra.mxu0 0
    %148 = vmatprep.subr.bf16.mxu0 0
    %149 = vmatpush1.bf16.msra.mxu0 0
    %150 = vmatprep.subr.bf16.mxu0 0
    %151 = vmatpush1.bf16.msra.mxu0 0
    %152 = vmatprep.subr.bf16.mxu0 0
    %153 = vmatpush1.bf16.msra.mxu0 0
    %154 = vmatprep.subr.bf16.mxu0 0
    %155 = vmatpush1.bf16.msra.mxu0 0
    %156 = vmatprep.subr.bf16.mxu0 0
    %157 = vmatpush1.bf16.msra.mxu0 0
    %158 = vmatprep.subr.bf16.mxu0 0
    %159 = vmatpush1.bf16.msra.mxu0 %v94
    %160 = vmatprep.subr.bf16.mxu0 0
    %161 = vmatpush1.bf16.msra.mxu0 %v91
    %162 = vmatprep.subr.bf16.mxu0 0
    %163 = vmatpush2.bf16.msra.mxu0 0
    %164 = vmatprep.subr.bf16.mxu0 0
    %165 = vmatpush2.bf16.msra.mxu0 0
    %166 = vmatprep.subr.bf16.mxu0 0
    %167 = vmatpush2.bf16.msra.mxu0 0
    %168 = vmatprep.subr.bf16.mxu0 0
    %169 = vmatpush2.bf16.msra.mxu0 0
    %170 = vmatprep.subr.bf16.mxu0 0
    %171 = vmatpush2.bf16.msra.mxu0 0
    %172 = vmatprep.subr.bf16.mxu0 0
    %173 = vmatpush2.bf16.msra.mxu0 0
    %174 = vmatprep.subr.bf16.mxu0 0
    %175 = vmatpush2.bf16.msra.mxu0 0
    %176 = vmatprep.subr.bf16.mxu0 0
    %177 = vmatpush2.bf16.msra.mxu0 0
    %178 = vmatprep.mubr.bf16.mxu0 0
    %179 = vmatmul.mubr.bf16.gmra.mxu0 %v103
    %v180 = vpop.f32.mrf.mxu0
    %v181 = vadd.f32 %v65, %v180
    %v182 = vpop.f32.mrf.mxu0
    %v183 = vpop.f32.mrf.mxu0
    %v184 = vpop.f32.mrf.mxu0
    %185 = vdwg.mxu0
    %v186 = vsub.f32 0.0, %v140
    %v187 = vsub.f32 0.0, %v142
    %v188 = vsub.f32 0.0, %v181
    %v189 = vmul.f32 %v186, 1.442695
    %v190 = vpow.pop %v189
    %v191 = vmul.f32 %v187, 1.442695
    %v192 = vpow.pop %v191
    %v193 = vmul.f32 %v188, 1.442695
    %v194 = vpow.pop %v193
    %v195 = vadd.f32 %v190, 1.0
    %v196 = vadd.f32 %v192, 1.0
    %v197 = vadd.f32 %v194, 1.0
    %v198 = vrcp.pop %v195
    %v199 = vrcp.pop %v196
    %v200 = vrcp.pop %v197
    %201 = vst [vmem:[#allocation7] sm:$0xff] %v198
    %202 = vst [vmem:[#allocation7 + $0x8] sm:$0xff] %v199
    %203 = vst [vmem:[#allocation7 + $0x10] sm:$0xff] %v200
    // Predicated region
    $region22: #{_mlp_forward.1} parent=1 // pred_check
      _
    $region23: #{_mlp_forward.1} parent=1 // pred_check_branch
      %205 = sbr.rel (0) target = $region25
    $region24: #{_mlp_forward.1} parent=1 // pred_region
      %s207 = ssub.s32 384, 384
      %208 = vsyncadd [#allocation4], %s207
      %s210 = sshll.u32 [#allocation7], 4
      %s211 = int_to_ptr.vmem [resolvable:$true] %s210
      %213 = dma.vmem_to_hbm [thread:$0]  %s211, 384, %s3, [#allocation4]
    $region25: #{_mlp_forward.1} parent=1 // pred_fallthru
      _
    // Predicated region
    $region26: #{_mlp_forward.1} parent=1 // pred_check
      _
    $region27: #{_mlp_forward.1} parent=1 // pred_check_branch
      %215 = sbr.rel (0) target = $region29
    $region28: #{_mlp_forward.1} parent=1 // pred_region
      %216 = dma.done [#allocation4], 384
    $region29: #{_mlp_forward.1} parent=1 // pred_fallthru
      _
    %217 = vsyncpa [#allocation3], 1
    %218 = vsyncpa [#allocation6], 1
    %219 = vsyncpa [#allocation4], 1

</llo_original>
